<compile_context>
chip_gen: v6e
topology: v6e:2x2x1
jax: 0.10.0
libtpu: 0.0.40
codegen_flags: <defaults>
</compile_context>

<pallas_src>
import functools

import jax
import jax.numpy as jnp
from jax.experimental import pallas as pl
from jax.experimental.pallas import tpu as pltpu


def _margin_loss_kernel(preds_ref, out_ref, *, margin, n_rows, tm,
                        tiles_per_chunk, needs_mask):
    ci = pl.program_id(0)          # parallel chunk axis (megacore on v7x)
    ti = pl.program_id(1)          # sequential reduction axis within a chunk

    # The output block index depends only on ci, so out_ref stays resident in
    # VMEM across the whole ti sweep -> use it directly as the accumulator.
    @pl.when(ti == 0)
    def _init():
        out_ref[...] = jnp.zeros_like(out_ref)

    p = preds_ref[...].astype(jnp.float32)              # (tm, C) tile
    correct = p[:, 0:1]                                 # correct-class score
    loss = jnp.maximum(margin - correct + p, 0.0)       # relu(margin - correct + preds)

    if needs_mask:
        # Mask rows past the real end of the array (partial last tile only;
        # one VPU select per tile, hidden under the DMA).
        row0 = (ci * tiles_per_chunk + ti) * tm
        rid = row0 + jax.lax.broadcasted_iota(jnp.int32, loss.shape, 0)
        loss = jnp.where(rid < n_rows, loss, 0.0)

    # Reduce the (tm, C) tile to a vreg-shaped (8, C) partial using only
    # cross-vreg VPU adds (the reshape preserves the (sublane, lane) layout);
    # the full cross-lane reduce is deferred to the wrapper.
    c = loss.shape[1]
    partial = loss.reshape(tm // 8, 8, c).sum(axis=0)   # (8, C)
    out_ref[...] += partial[None]                       # (1, 8, C)


def margin_loss(preds, margin, *, tm=None,
                vmem_input_budget_bytes=8 * 1024 * 1024):
    """preds: [..., C] array. Returns the scalar mean margin loss in preds.dtype."""
    orig_dtype = preds.dtype
    c = preds.shape[-1]
    preds2d = preds.reshape(-1, c)          # flatten leading dims -> [N, C]
    n = preds2d.shape[0]

    # NOTE: if the caller can tolerate bf16 scores, casting preds to bf16
    # before this call halves HBM traffic (~2x) since the kernel is BW-bound.
    itemsize = jnp.dtype(preds2d.dtype).itemsize
    c_pad = -(-c // 128) * 128              # lanes pad to multiples of 128 in VMEM
    bytes_per_row = c_pad * itemsize

    # --- row-tile sizing: biggest tile whose DOUBLE-BUFFERED input fits the
    # conservative VMEM budget (works unchanged on v5e/v6e/v7x). ---
    if tm is None:
        tm = vmem_input_budget_bytes // (2 * bytes_per_row)   # 2 = double buffer
        tm = min(tm, 4096)
    tm = min(tm, -(-n // 8) * 8)            # no point tiling past the row count
    tm = max(8, (tm // 8) * 8)              # multiple of 8 sublanes

    num_tiles = -(-n // tm)                 # cdiv
    # Split row tiles into 2 chunks when it divides evenly so the leading
    # ("parallel") grid axis can be sharded across v7x's 2 TensorCores.
    num_chunks = 2 if (num_tiles >= 2 and num_tiles % 2 == 0) else 1
    tiles_per_chunk = num_tiles // num_chunks
    needs_mask = (n % tm) != 0

    kernel = functools.partial(
        _margin_loss_kernel,
        margin=float(margin),
        n_rows=n,
        tm=tm,
        tiles_per_chunk=tiles_per_chunk,
        needs_mask=needs_mask,
    )

    partials = pl.pallas_call(
        kernel,
        out_shape=jax.ShapeDtypeStruct((num_chunks, 8, c), jnp.float32),
        grid_spec=pltpu.PrefetchScalarGridSpec(
            num_scalar_prefetch=0,
            grid=(num_chunks, tiles_per_chunk),
            in_specs=[
                pl.BlockSpec((tm, c), lambda ci, ti: (ci * tiles_per_chunk + ti, 0)),
            ],
            out_specs=pl.BlockSpec((1, 8, c), lambda ci, ti: (ci, 0, 0)),
        ),
        compiler_params=pltpu.CompilerParams(
            dimension_semantics=("parallel", "arbitrary"),
        ),
    )(preds2d)

    # Tiny tail: sum the per-chunk vreg partials and fold in the mean's 1/total
    # as a compile-time constant multiply.
    inv_total = 1.0 / float(n * c)
    return (jnp.sum(partials) * inv_total).astype(orig_dtype)


def margin_loss_ref(preds, margin):
    correct = preds[..., 0:1]
    return jnp.mean(jax.nn.relu(margin - correct + preds))


if __name__ == "__main__":
    margin = 0.5

    # Small shape consistent with the module: preds [batch, num_candidates],
    # column 0 is the correct-class score.
    key = jax.random.PRNGKey(0)
    batch, num_cands = 16, 128
    preds = jax.random.normal(key, (batch, num_cands), dtype=jnp.float32)

    out = jax.block_until_ready(margin_loss(preds, margin))
    ref = margin_loss_ref(preds, margin)
    assert jnp.allclose(out, ref, rtol=1e-5, atol=1e-5), (out, ref)

    # Second small case exercising the masked (non-divisible) path and C != 128.
    preds2 = jax.random.normal(jax.random.PRNGKey(1), (3, 7, 36), dtype=jnp.float32)
    out2 = jax.block_until_ready(margin_loss(preds2, margin))
    ref2 = margin_loss_ref(preds2, margin)
    assert jnp.allclose(out2, ref2, rtol=1e-5, atol=1e-5), (out2, ref2)

    print("KERNEL_OK")
</pallas_src>

<mosaic_0001>
module attributes {stable_mosaic.version = 11 : i64} {
  func.func @_margin_loss_kernel(%arg0: i32, %arg1: i32, %arg2: memref<16x128xf32, #tpu.memory_space<vmem>>, %arg3: memref<1x8x128xf32, #tpu.memory_space<vmem>>) attributes {dimension_semantics = [#tpu.dimension_semantics<parallel>, #tpu.dimension_semantics<arbitrary>], iteration_bounds = array<i64: 1, 1>, scalar_prefetch = 0 : i64, scratch_operands = 0 : i64, tpu.core_type = #tpu.core_type<tc>, window_params = [{transform_indices = @transform_0, window_bounds = array<i64: 16, 128>}, {transform_indices = @transform_1, window_bounds = array<i64: 1, 8, 128>}]} {
    %c0_i32 = arith.constant 0 : i32
    %0 = arith.cmpi eq, %arg1, %c0_i32 : i32
    %1 = arith.extui %0 : i1 to i32
    %c0_i32_0 = arith.constant 0 : i32
    %2 = arith.cmpi ne, %1, %c0_i32_0 : i32
    scf.if %2 {
      %cst_10 = arith.constant 0.000000e+00 : f32
      %17 = vector.broadcast %cst_10 : f32 to vector<1x8x128xf32>
      %c0_11 = arith.constant 0 : index
      %c0_12 = arith.constant 0 : index
      %c0_13 = arith.constant 0 : index
      %18 = vector.load %arg3[%c0_11, %c0_12, %c0_13] : memref<1x8x128xf32, #tpu.memory_space<vmem>>, vector<1x8x128xf32>
      tpu.vector_store %arg3[%c0_11, %c0_12, %c0_13], %17 {strides = array<i32>} : memref<1x8x128xf32, #tpu.memory_space<vmem>>, vector<1x8x128xf32>,
    } else {
    }
    %c0 = arith.constant 0 : index
    %c0_1 = arith.constant 0 : index
    %3 = vector.load %arg2[%c0, %c0_1] : memref<16x128xf32, #tpu.memory_space<vmem>>, vector<16x128xf32>
    %4 = vector.extract_strided_slice %3 {offsets = [0, 0], sizes = [16, 1], strides = [1, 1]} : vector<16x128xf32> to vector<16x1xf32>
    %cst = arith.constant 5.000000e-01 : f32
    %5 = vector.broadcast %cst : f32 to vector<16x1xf32>
    %6 = arith.subf %5, %4 : vector<16x1xf32>
    %7 = vector.broadcast %6 : vector<16x1xf32> to vector<16x128xf32>
    %8 = arith.addf %7, %3 : vector<16x128xf32>
    %cst_2 = arith.constant 0.000000e+00 : f32
    %9 = vector.broadcast %cst_2 : f32 to vector<16x128xf32>
    %10 = arith.maximumf %8, %9 : vector<16x128xf32>
    %11 = vector.shape_cast %10 : vector<16x128xf32> to vector<2x8x128xf32>
    %cst_3 = arith.constant dense<0.000000e+00> : vector<8x128xf32>
    %12 = vector.multi_reduction <add>, %11, %cst_3 [0] : vector<2x8x128xf32> to vector<8x128xf32>
    %c0_4 = arith.constant 0 : index
    %c0_5 = arith.constant 0 : index
    %c0_6 = arith.constant 0 : index
    %13 = vector.load %arg3[%c0_4, %c0_5, %c0_6] : memref<1x8x128xf32, #tpu.memory_space<vmem>>, vector<1x8x128xf32>
    %14 = vector.shape_cast %12 : vector<8x128xf32> to vector<1x8x128xf32>
    %15 = arith.addf %13, %14 : vector<1x8x128xf32>
    %c0_7 = arith.constant 0 : index
    %c0_8 = arith.constant 0 : index
    %c0_9 = arith.constant 0 : index
    %16 = vector.load %arg3[%c0_7, %c0_8, %c0_9] : memref<1x8x128xf32, #tpu.memory_space<vmem>>, vector<1x8x128xf32>
    tpu.vector_store %arg3[%c0_7, %c0_8, %c0_9], %15 {strides = array<i32>} : memref<1x8x128xf32, #tpu.memory_space<vmem>>, vector<1x8x128xf32>,
    return
  }
  func.func @transform_0(%arg0: i32, %arg1: i32) -> (i32, i32) {
    %c1_i32 = arith.constant 1 : i32
    %0 = arith.muli %arg0, %c1_i32 : i32
    %1 = arith.addi %0, %arg1 : i32
    %c0_i32 = arith.constant 0 : i32
    %c0_i32_0 = arith.constant 0 : i32
    return %1, %c0_i32 : i32, i32
  }
  func.func @transform_1(%arg0: i32, %arg1: i32) -> (i32, i32, i32) {
    %c0_i32 = arith.constant 0 : i32
    %c0_i32_0 = arith.constant 0 : i32
    %c0_i32_1 = arith.constant 0 : i32
    return %arg0, %c0_i32, %c0_i32_0 : i32, i32, i32
  }
}

</mosaic_0001>

<llo_original>
// kernel: tpu_custom_call.1
$region0: #{tpu_custom_call.1}
  #allocation0 [shape = 'u32[]', space=smem, size = 0x4, offset = 0x4, fixed_abs, tag = 'smem constant byte address 0x4 - core index']
  #allocation1 [shape = 'u32[144,128]{1,0:T(1,128)}', space=vmem, size = 0x12000, scoped, tag = 'internal scratch']
  %s0 = inlined_call_operand.hbm [shape: f32[16,128], index: 0, kind: input, shape index: {}]
  %s1 = inlined_call_operand.hbm [shape: f32[1,8,128], index: 1, kind: output, shape index: {}]
  %s2 = sld [smem:[#allocation0]]
  $region22: #{tpu_custom_call.1} parent=0
    _
  %s4 = ssub.s32 1, %s2
  %s5 = scalar_select 0, %s4, %s2
  $region1: #{tpu_custom_call.1} parent=0
    #allocation2 [shape = 'u8[8192]{0}', space=vmem, size = 0x2000, scoped, tag = 'input window, operand 0, single buffered']
    #allocation3 [shape = 's32[1]{0}', space=sflag, size = 0x4, scoped, tag = 'scoped memory for tpu_custom_call.1']
    #allocation4 [shape = 's32[1]{0}', space=sflag, size = 0x4, scoped, tag = 'scoped memory for tpu_custom_call.1']
    #allocation5 [shape = 'u8[4096]{0}', space=vmem, size = 0x1000, scoped, tag = 'output window, operand 0, single buffered']
    %6 = vsyncpa [#allocation3], 0
    %7 = vsyncpa [#allocation4], 0
    // Predicated region
    $region2: #{tpu_custom_call.1} parent=1 // pred_check
      _
    $region3: #{tpu_custom_call.1} parent=1 // pred_check_branch
      %9 = sbr.rel (0) target = $region5
    $region4: #{tpu_custom_call.1} parent=1 // pred_region
      %s10 = sadd.s32 0, 0
      %s11 = smul.u32 2, %s10
      %s13 = ssub.s32 256, 256
      %14 = vsyncadd [#allocation3], %s13
      %s15 = smul.addr %s11, 128
      %s16 = scalar_lea.hbm %s0, %s15
      %s17 = sshll.u32 [#allocation2], 4
      %s18 = int_to_ptr.vmem [resolvable:$true] %s17
      %23 = dma.hbm_to_vmem [thread:$0]  %s16, 256, %s18, [#allocation3], 128, 128, 8
    $region5: #{tpu_custom_call.1} parent=1 // pred_fallthru
      _
    // Predicated region
    $region6: #{tpu_custom_call.1} parent=1 // pred_check
      _
    $region7: #{tpu_custom_call.1} parent=1 // pred_check_branch
      %25 = sbr.rel (0) target = $region9
    $region8: #{tpu_custom_call.1} parent=1 // pred_region
      %26 = dma.done [#allocation3], 256
    $region9: #{tpu_custom_call.1} parent=1 // pred_fallthru
      _
    %s27 = sadd.s32 0, 0
    %s28 = smul.u32 2, %s27
    %p29 = scmp.eq.s32.totalorder 0, 0
    // Predicated region
    $region10: #{tpu_custom_call.1} parent=1 // pred_check
      %p30 = pneg %p29
    $region11: #{tpu_custom_call.1} parent=1 // pred_check_branch
      %32 = sbr.rel (%p30) target = $region13
    $region12: #{tpu_custom_call.1} parent=1 // pred_region
      %33 = vst [vmem:[#allocation5] sm:$0xff] 0.0
    $region13: #{tpu_custom_call.1} parent=1 // pred_fallthru
      _
    %v34 = vld [vmem:[#allocation2] sm:$0xff]
    %v35 = vld [vmem:[#allocation2 + $0x8] sm:$0xff]
    %v36 = vsub.f32 0.5, %v34
    %v37 = vsub.f32 0.5, %v35
    %39 = vset.pattern.permute.xlu0 0
    %40 = vperm.xlu0 %39, %v36
    %v41 = vpop.permute.xlu0 %40
    %44 = vset.pattern.permute.xlu0 0
    %45 = vperm.xlu0 %44, %v37
    %v46 = vpop.permute.xlu0 %45
    %v48 = vadd.f32 %v41, %v34
    %v49 = vadd.f32 %v46, %v35
    %v50 = vmax.f32 %v48, 0.0
    %v51 = vmax.f32 %v49, 0.0
    %v52 = vadd.f32 %v50, %v51
    %v53 = vld [vmem:[#allocation5] sm:$0xff]
    %v54 = vadd.f32 %v53, %v52
    %55 = vst [vmem:[#allocation5] sm:$0xff] %v54
    // Predicated region
    $region14: #{tpu_custom_call.1} parent=1 // pred_check
      _
    $region15: #{tpu_custom_call.1} parent=1 // pred_check_branch
      %57 = sbr.rel (0) target = $region17
    $region16: #{tpu_custom_call.1} parent=1 // pred_region
      %s59 = ssub.s32 128, 128
      %60 = vsyncadd [#allocation4], %s59
      %s62 = sshll.u32 [#allocation5], 4
      %s63 = int_to_ptr.vmem [resolvable:$true] %s62
      %65 = dma.vmem_to_hbm [thread:$0]  %s63, 128, %s1, [#allocation4]
    $region17: #{tpu_custom_call.1} parent=1 // pred_fallthru
      _
    // Predicated region
    $region18: #{tpu_custom_call.1} parent=1 // pred_check
      _
    $region19: #{tpu_custom_call.1} parent=1 // pred_check_branch
      %67 = sbr.rel (0) target = $region21
    $region20: #{tpu_custom_call.1} parent=1 // pred_region
      %68 = dma.done [#allocation4], 128
    $region21: #{tpu_custom_call.1} parent=1 // pred_fallthru
      _
    %69 = vsyncpa [#allocation3], 1
    %70 = vsyncpa [#allocation4], 1

</llo_original>
